<compile_context>
chip_gen: v6e
topology: v6e:2x2x1
jax: 0.10.0
libtpu: 0.0.40
codegen_flags: <defaults>
</compile_context>

<pallas_src>
import functools

import jax
import jax.numpy as jnp
from jax import lax
from jax.experimental import pallas as pl
from jax.experimental.pallas import tpu as pltpu

_MIB = 1024 * 1024


def _round_up(x, m):
    return ((x + m - 1) // m) * m


@functools.lru_cache(maxsize=1)
def _vmem_budget():
    """(scoped_vmem_limit_bytes, physical_vmem_bytes), generation-aware."""
    try:
        cap = int(pltpu.get_tpu_info().vmem_capacity_bytes)
    except Exception:
        cap = 64 * _MIB  # v7x-safe default
    scoped = max(32 * _MIB, min(cap // 2, 100 * _MIB))
    return scoped, cap


def _compiler_params():
    scoped, _ = _vmem_budget()
    return pltpu.CompilerParams(dimension_semantics=("parallel",),
                                vmem_limit_bytes=scoped)


def _kernel_vmem_bytes(tm, d_model, d_ffn, nq_pad):
    # Worst of the fused kernels (proj vs FFN): double-buffered bf16 row blocks,
    # double-buffered bf16 weights, f32 intermediates; 1.5x headroom.
    ffn = (2 * 2 * tm * d_model * 2                          # x + out row blocks (bf16, 2-buf)
           + 2 * 2 * (d_model * d_ffn + d_ffn * d_model)     # w1, w2 (bf16, 2-buf)
           + tm * d_ffn * 4 + 2 * tm * d_model * 4)          # f32 hidden + LN temps
    proj = (3 * 2 * tm * d_model * 2                         # src, pos, value blocks
            + 2 * tm * nq_pad * 2                            # qcat out block
            + 2 * 2 * (d_model * d_model + d_model * nq_pad)  # weights (bf16, 2-buf)
            + tm * nq_pad * 4 + tm * d_model * 4)             # f32 temps
    return int(1.5 * max(ffn, proj))


def _choose_tm(rows, d_model, d_ffn, nq_pad):
    scoped, cap = _vmem_budget()
    tm_cap = 1024 if cap >= 100 * _MIB else 512               # bigger tiles on v5e/v6e
    for tm in (1024, 512, 256, 128):
        if tm > tm_cap:
            continue
        if tm > 128 and rows < 8 * tm:
            continue                                           # keep >= ~8 grid steps
        if _kernel_vmem_bytes(tm, d_model, d_ffn, nq_pad) <= scoped:
            return tm
    return 128


# --------------------------------------------------------------------------- #
# Pallas kernels (row-tiled over the flattened (B*Len_padded) token axis)
# --------------------------------------------------------------------------- #
def _proj_kernel(*refs, has_pos, has_mask):
    """Fused: value = src@Wv+bv (optionally masked); qcat = (src[+pos])@[Woff|Wattn]+b."""
    idx = 0
    src_ref = refs[idx]; idx += 1
    pos_ref = None
    if has_pos:
        pos_ref = refs[idx]; idx += 1
    keep_ref = None
    if has_mask:
        keep_ref = refs[idx]; idx += 1
    wv_ref, bv_ref, wq_ref, bq_ref, val_ref, q_ref = refs[idx:]

    s = src_ref[...]                                   # bf16
    if pos_ref is None:
        q_in = s
    else:
        q_in = (s.astype(jnp.float32) + pos_ref[...].astype(jnp.float32)).astype(jnp.bfloat16)

    val = jnp.dot(s, wv_ref[...], preferred_element_type=jnp.float32) + bv_ref[...]
    if keep_ref is not None:
        val = val * keep_ref[...]                      # (tm,1) keep multiplier, fused masking
    qo = jnp.dot(q_in, wq_ref[...], preferred_element_type=jnp.float32) + bq_ref[...]

    val_ref[...] = val.astype(val_ref.dtype)
    q_ref[...] = qo.astype(q_ref.dtype)


def _proj_add_ln_kernel(x_ref, r_ref, w_ref, b_ref, g_ref, bb_ref, o_ref):
    """Fused: out_proj(x) + residual(r) -> LayerNorm (f32 math, bf16 I/O)."""
    y = jnp.dot(x_ref[...], w_ref[...], preferred_element_type=jnp.float32) + b_ref[...]
    y = y + r_ref[...].astype(jnp.float32)
    mean = jnp.mean(y, axis=-1, keepdims=True)
    c = y - mean
    var = jnp.mean(c * c, axis=-1, keepdims=True)
    o_ref[...] = ((c * lax.rsqrt(var + 1e-5)) * g_ref[...] + bb_ref[...]).astype(o_ref.dtype)


def _ffn_add_ln_kernel(x_ref, w1_ref, b1_ref, w2_ref, b2_ref, g_ref, bb_ref, o_ref):
    """Fused FFN: relu(x@W1+b1)@W2+b2 + residual(x) -> LayerNorm; hidden stays on-chip."""
    xb = x_ref[...]                                    # bf16
    h = jnp.dot(xb, w1_ref[...], preferred_element_type=jnp.float32) + b1_ref[...]
    h = jnp.maximum(h, 0.0)
    y = jnp.dot(h.astype(jnp.bfloat16), w2_ref[...],
                preferred_element_type=jnp.float32) + b2_ref[...]
    y = y + xb.astype(jnp.float32)
    mean = jnp.mean(y, axis=-1, keepdims=True)
    c = y - mean
    var = jnp.mean(c * c, axis=-1, keepdims=True)
    o_ref[...] = ((c * lax.rsqrt(var + 1e-5)) * g_ref[...] + bb_ref[...]).astype(o_ref.dtype)


# --------------------------------------------------------------------------- #
# pallas_call wrappers (rows pre-padded to a multiple of tm by the caller)
# --------------------------------------------------------------------------- #
def proj_value_query_op(src2, pos2, keep2, wv_bf16, bv_row, wq_bf16, bq_row, tm):
    M, D = src2.shape
    Nqp = wq_bf16.shape[1]
    has_pos = pos2 is not None
    has_mask = keep2 is not None
    inputs = [src2]
    in_specs = [pl.BlockSpec((tm, D), lambda i: (i, 0))]
    if has_pos:
        inputs.append(pos2)
        in_specs.append(pl.BlockSpec((tm, D), lambda i: (i, 0)))
    if has_mask:
        inputs.append(keep2)
        in_specs.append(pl.BlockSpec((tm, 1), lambda i: (i, 0)))
    inputs += [wv_bf16, bv_row, wq_bf16, bq_row]
    # NOTE: pipeline_mode=pl.Buffered(1) on these constant-index weight blocks would
    # reclaim a little VMEM on v7x; left at the default for maximum portability.
    in_specs += [pl.BlockSpec((D, D), lambda i: (0, 0)),
                 pl.BlockSpec((1, D), lambda i: (0, 0)),
                 pl.BlockSpec((D, Nqp), lambda i: (0, 0)),
                 pl.BlockSpec((1, Nqp), lambda i: (0, 0))]
    value, qcat = pl.pallas_call(
        functools.partial(_proj_kernel, has_pos=has_pos, has_mask=has_mask),
        out_shape=(jax.ShapeDtypeStruct((M, D), jnp.bfloat16),
                   jax.ShapeDtypeStruct((M, Nqp), jnp.bfloat16)),
        grid=(M // tm,),
        in_specs=in_specs,
        out_specs=(pl.BlockSpec((tm, D), lambda i: (i, 0)),
                   pl.BlockSpec((tm, Nqp), lambda i: (i, 0))),
        compiler_params=_compiler_params(),
    )(*inputs)
    return value, qcat


def proj_add_ln_op(x, res, w_bf16, b_row, g_row, bb_row, tm):
    M, D = x.shape
    return pl.pallas_call(
        _proj_add_ln_kernel,
        out_shape=jax.ShapeDtypeStruct((M, D), jnp.bfloat16),
        grid=(M // tm,),
        in_specs=[pl.BlockSpec((tm, D), lambda i: (i, 0)),
                  pl.BlockSpec((tm, D), lambda i: (i, 0)),
                  pl.BlockSpec((D, D), lambda i: (0, 0)),
                  pl.BlockSpec((1, D), lambda i: (0, 0)),
                  pl.BlockSpec((1, D), lambda i: (0, 0)),
                  pl.BlockSpec((1, D), lambda i: (0, 0))],
        out_specs=pl.BlockSpec((tm, D), lambda i: (i, 0)),
        compiler_params=_compiler_params(),
    )(x, res, w_bf16, b_row, g_row, bb_row)


def ffn_add_ln_op(x, w1_bf16, b1_row, w2_bf16, b2_row, g_row, bb_row, tm):
    M, D = x.shape
    F = w1_bf16.shape[1]
    return pl.pallas_call(
        _ffn_add_ln_kernel,
        out_shape=jax.ShapeDtypeStruct((M, D), jnp.bfloat16),
        grid=(M // tm,),
        in_specs=[pl.BlockSpec((tm, D), lambda i: (i, 0)),
                  pl.BlockSpec((D, F), lambda i: (0, 0)),
                  pl.BlockSpec((1, F), lambda i: (0, 0)),
                  pl.BlockSpec((F, D), lambda i: (0, 0)),
                  pl.BlockSpec((1, D), lambda i: (0, 0)),
                  pl.BlockSpec((1, D), lambda i: (0, 0)),
                  pl.BlockSpec((1, D), lambda i: (0, 0))],
        out_specs=pl.BlockSpec((tm, D), lambda i: (i, 0)),
        compiler_params=_compiler_params(),
    )(x, w1_bf16, b1_row, w2_bf16, b2_row, g_row, bb_row)


# --------------------------------------------------------------------------- #
# Plain-JAX glue (mirrors the PyTorch reference code)
# --------------------------------------------------------------------------- #
def _ln_ref(y, gamma, beta):
    mean = jnp.mean(y, -1, keepdims=True)
    var = jnp.mean((y - mean) ** 2, -1, keepdims=True)
    return (y - mean) / jnp.sqrt(var + 1e-5) * gamma + beta


def get_reference_points(spatial_shapes, valid_ratios):
    # Faithful port of DeformableTransformerEncoder.get_reference_points
    ref_list = []
    for lvl, (H_, W_) in enumerate(spatial_shapes):
        ref_y, ref_x = jnp.meshgrid(
            jnp.linspace(0.5, H_ - 0.5, H_, dtype=jnp.float32),
            jnp.linspace(0.5, W_ - 0.5, W_, dtype=jnp.float32),
            indexing="ij")
        ref_y = ref_y.reshape(-1)[None] / (valid_ratios[:, None, lvl, 0] * H_)
        ref_x = ref_x.reshape(-1)[None] / (valid_ratios[:, None, lvl, 1] * W_)
        ref = jnp.stack((ref_y, ref_x), -1)
        ref_list.append(ref)
    reference_points = jnp.concatenate(ref_list, 1)
    reference_points = reference_points[:, :, None] * valid_ratios[:, None]
    return reference_points  # (B, Len, n_levels, 2)


def ms_deform_attn_core(value, spatial_shapes, sampling_locations, attn_weights):
    # value: (B, Lp, H, Dh) (bf16 on the Pallas path); sampling_locations:
    # (B, Lq, H, L, P, 2) (x, y); attn_weights: (B, Lq, H, L, P), softmaxed over L*P.
    # Bilinear sampling matches F.grid_sample(mode='bilinear', padding_mode='zeros',
    # align_corners=False). Attention weights are folded into the corner weights and
    # summed over (levels, points) here -> no (B, Lq, H, L*P, Dh) intermediate.
    # TODO(synk): the data-dependent bilinear gather stays in plain JAX glue - there is
    # no clean Pallas TPU dynamic-gather lowering for arbitrary hw; the bf16 value
    # storage already halves its HBM read traffic.
    B, _, H, Dh = value.shape
    _, Lq, _, L, P, _ = sampling_locations.shape
    acc = jnp.zeros((B * H, Lq, Dh), jnp.float32)
    start = 0
    for lvl, (H_, W_) in enumerate(spatial_shapes):
        hw = H_ * W_
        v = value[:, start:start + hw]                                  # (B, hw, H, Dh)
        start += hw
        v = jnp.transpose(v, (0, 2, 1, 3)).reshape(B * H, hw, Dh)
        loc = sampling_locations[:, :, :, lvl]                          # (B, Lq, H, P, 2)
        loc = jnp.transpose(loc, (0, 2, 1, 3, 4)).reshape(B * H, Lq, P, 2)
        aw = jnp.transpose(attn_weights[:, :, :, lvl], (0, 2, 1, 3)).reshape(B * H, Lq, P)
        x = loc[..., 0] * W_ - 0.5
        y = loc[..., 1] * H_ - 0.5
        x0 = jnp.floor(x)
        y0 = jnp.floor(y)

        def corner(yy, xx, wgt):
            valid = (xx >= 0) & (xx <= W_ - 1) & (yy >= 0) & (yy <= H_ - 1)
            xi = jnp.clip(xx, 0, W_ - 1).astype(jnp.int32)
            yi = jnp.clip(yy, 0, H_ - 1).astype(jnp.int32)
            idx = (yi * W_ + xi).reshape(B * H, Lq * P, 1)
            idx = jnp.broadcast_to(idx, (B * H, Lq * P, Dh))
            g = jnp.take_along_axis(v, idx, axis=1).reshape(B * H, Lq, P, Dh)
            w = wgt * valid.astype(jnp.float32) * aw                    # folded attn weight
            return jnp.einsum('blp,blpd->bld', w, g)                    # sum over points

        acc = acc + corner(y0, x0, (x0 + 1 - x) * (y0 + 1 - y))
        acc = acc + corner(y0, x0 + 1, (x - x0) * (y0 + 1 - y))
        acc = acc + corner(y0 + 1, x0, (x0 + 1 - x) * (y - y0))
        acc = acc + corner(y0 + 1, x0 + 1, (x - x0) * (y - y0))
    acc = acc.reshape(B, H, Lq, Dh)
    return jnp.transpose(acc, (0, 2, 1, 3)).reshape(B * Lq, H * Dh)      # f32


# --------------------------------------------------------------------------- #
# Deformable encoder layer + encoder stack
# --------------------------------------------------------------------------- #
def encoder_layer_forward(p, src, pos, reference_points, spatial_shapes,
                          spatial_shapes_arr, padding_mask=None, use_pallas=True,
                          n_heads=4, n_points=4, tm=128):
    B, Lp, D = src.shape
    H, L, P = n_heads, len(spatial_shapes), n_points
    Dh = D // H
    Noff = H * L * P * 2
    Nq = Noff + H * L * P

    s2 = src.reshape(B * Lp, D)
    pos2 = None if pos is None else pos.reshape(B * Lp, D)

    if use_pallas:
        keep2 = None
        if padding_mask is not None:
            keep2 = 1.0 - padding_mask.reshape(B * Lp, 1).astype(jnp.float32)
        value2, qcat = proj_value_query_op(
            s2, pos2, keep2, p["value_w_bf16"], p["value_b_row"],
            p["wq_bf16"], p["bq_row"], tm)
        qcat = qcat[:, :Nq]                            # drop the lane-padding columns
    else:
        wq = jnp.concatenate([p["samp_off_w"], p["attn_w_w"]], axis=1)
        bq = jnp.concatenate([p["samp_off_b"], p["attn_w_b"]], axis=0)
        q2 = s2 if pos2 is None else s2 + pos2
        value2 = s2 @ p["value_w"] + p["value_b"]
        qcat = q2 @ wq + bq
        if padding_mask is not None:
            value2 = jnp.where(padding_mask.reshape(B * Lp, 1), 0.0, value2)

    offs = qcat[:, :Noff].astype(jnp.float32).reshape(B, Lp, H, L, P, 2)
    logits = qcat[:, Noff:].astype(jnp.float32).reshape(B, Lp, H, L * P)
    attn_w = jax.nn.softmax(logits, axis=-1).reshape(B, Lp, H, L, P)

    offset_normalizer = jnp.stack(
        [spatial_shapes_arr[:, 1], spatial_shapes_arr[:, 0]], -1).astype(jnp.float32)
    sampling_locations = (reference_points[:, :, None, :, None, :]
                          + offs / offset_normalizer[None, None, None, :, None, :])

    attn = ms_deform_attn_core(value2.reshape(B, Lp, H, Dh), spatial_shapes,
                               sampling_locations, attn_w)              # (B*Lp, D) f32

    if use_pallas:
        src_n = proj_add_ln_op(attn.astype(jnp.bfloat16), s2,
                               p["out_w_bf16"], p["out_b_row"],
                               p["norm1_g_row"], p["norm1_b_row"], tm)
        out = ffn_add_ln_op(src_n, p["lin1_w_bf16"], p["lin1_b_row"],
                            p["lin2_w_bf16"], p["lin2_b_row"],
                            p["norm2_g_row"], p["norm2_b_row"], tm)
    else:
        y = attn @ p["out_w"] + p["out_b"] + s2
        src_n = _ln_ref(y, p["norm1_g"], p["norm1_b"])
        h = jnp.maximum(src_n @ p["lin1_w"] + p["lin1_b"], 0.0)
        y2 = h @ p["lin2_w"] + p["lin2_b"] + src_n
        out = _ln_ref(y2, p["norm2_g"], p["norm2_b"])
    return out.reshape(B, Lp, D)


def deformable_transformer_encoder(params_list, src, spatial_shapes, spatial_shapes_arr,
                                   level_start_index, valid_ratios, pos=None,
                                   padding_mask=None, use_pallas=True,
                                   n_heads=4, n_points=4):
    del level_start_index  # unused by the pure-python ms_deform_attn core path
    B, Len, D = src.shape
    out_dtype = src.dtype
    reference_points = get_reference_points(spatial_shapes, valid_ratios)

    H, L, P = n_heads, len(spatial_shapes), n_points
    Nq = H * L * P * 3
    Nqp = _round_up(Nq, 128)
    d_ffn = params_list[0]["lin1_w"].shape[1]

    # Pad the token axis ONCE to a multiple of the row tile (and an even grid-step
    # count for v7x's 2 TensorCores); pad rows are inert (never gathered, sliced off).
    tm = _choose_tm(B * Len, D, d_ffn, Nqp)
    Lp = _round_up(Len, tm)
    if (B * (Lp // tm)) % 2 == 1:
        Lp += tm
    pad = Lp - Len
    if pad:
        src = jnp.pad(src, ((0, 0), (0, pad), (0, 0)))
        if pos is not None:
            pos = jnp.pad(pos, ((0, 0), (0, pad), (0, 0)))
        reference_points = jnp.pad(reference_points, ((0, 0), (0, pad), (0, 0), (0, 0)))
        if padding_mask is not None:
            padding_mask = jnp.pad(padding_mask, ((0, 0), (0, pad)), constant_values=True)

    output = src
    if use_pallas:                                     # bf16 activations between kernels
        output = output.astype(jnp.bfloat16)
        if pos is not None:
            pos = pos.astype(jnp.bfloat16)

    for p in params_list:
        output = encoder_layer_forward(p, output, pos, reference_points, spatial_shapes,
                                       spatial_shapes_arr, padding_mask, use_pallas,
                                       n_heads, n_points, tm)
    return output[:, :Len].astype(out_dtype)


def prepare_layer_params(p, d_model, d_ffn, n_heads, n_levels, n_points):
    """Hoisted weight prep: bf16 casts, [Woff|Wattn] concat, lane padding, bias rows."""
    Noff = n_heads * n_levels * n_points * 2
    Nq = Noff + n_heads * n_levels * n_points
    Nqp = _round_up(Nq, 128)
    wq = jnp.concatenate([p["samp_off_w"], p["attn_w_w"]], axis=1)
    bq = jnp.concatenate([p["samp_off_b"], p["attn_w_b"]], axis=0)
    wq = jnp.pad(wq, ((0, 0), (0, Nqp - Nq)))
    bq = jnp.pad(bq, ((0, Nqp - Nq),))

    q = dict(p)
    q["wq_bf16"] = wq.astype(jnp.bfloat16)
    q["bq_row"] = bq.reshape(1, Nqp)
    q["value_w_bf16"] = p["value_w"].astype(jnp.bfloat16)
    q["value_b_row"] = p["value_b"].reshape(1, d_model)
    q["out_w_bf16"] = p["out_w"].astype(jnp.bfloat16)
    q["out_b_row"] = p["out_b"].reshape(1, d_model)
    q["lin1_w_bf16"] = p["lin1_w"].astype(jnp.bfloat16)
    q["lin1_b_row"] = p["lin1_b"].reshape(1, d_ffn)
    q["lin2_w_bf16"] = p["lin2_w"].astype(jnp.bfloat16)
    q["lin2_b_row"] = p["lin2_b"].reshape(1, d_model)
    q["norm1_g_row"] = p["norm1_g"].reshape(1, d_model)
    q["norm1_b_row"] = p["norm1_b"].reshape(1, d_model)
    q["norm2_g_row"] = p["norm2_g"].reshape(1, d_model)
    q["norm2_b_row"] = p["norm2_b"].reshape(1, d_model)
    return q


def init_layer_params(key, d_model, d_ffn, n_heads, n_levels, n_points):
    ks = jax.random.split(key, 6)

    def lin(k, din, dout, scale=0.05):
        return (scale * jax.random.normal(k, (din, dout), jnp.float32),
                jnp.zeros((dout,), jnp.float32))

    p = {}
    p["samp_off_w"], p["samp_off_b"] = lin(ks[0], d_model, n_heads * n_levels * n_points * 2)
    p["attn_w_w"], p["attn_w_b"] = lin(ks[1], d_model, n_heads * n_levels * n_points)
    p["value_w"], p["value_b"] = lin(ks[2], d_model, d_model)
    p["out_w"], p["out_b"] = lin(ks[3], d_model, d_model)
    p["lin1_w"], p["lin1_b"] = lin(ks[4], d_model, d_ffn)
    p["lin2_w"], p["lin2_b"] = lin(ks[5], d_ffn, d_model)
    p["norm1_g"] = jnp.ones((d_model,), jnp.float32)
    p["norm1_b"] = jnp.zeros((d_model,), jnp.float32)
    p["norm2_g"] = jnp.ones((d_model,), jnp.float32)
    p["norm2_b"] = jnp.zeros((d_model,), jnp.float32)
    return prepare_layer_params(p, d_model, d_ffn, n_heads, n_levels, n_points)


if __name__ == "__main__":
    d_model, d_ffn = 32, 64
    n_heads, n_levels, n_points, num_layers = 4, 2, 4, 2
    spatial_shapes = [(16, 16), (8, 8)]                       # two feature-map levels
    spatial_shapes_arr = jnp.array(spatial_shapes, jnp.int32)
    level_start_index = jnp.concatenate(
        [jnp.zeros((1,), jnp.int32), jnp.cumsum(spatial_shapes_arr.prod(-1))[:-1]])
    B = 2
    Len = sum(h * w for h, w in spatial_shapes)               # 320

    key = jax.random.PRNGKey(0)
    k_src, k_pos, k_vr, k_par = jax.random.split(key, 4)
    src = jax.random.normal(k_src, (B, Len, d_model), jnp.float32)
    pos = 0.1 * jax.random.normal(k_pos, (B, Len, d_model), jnp.float32)
    valid_ratios = 0.8 + 0.2 * jax.random.uniform(k_vr, (B, n_levels, 2), jnp.float32)

    params_list = [init_layer_params(k, d_model, d_ffn, n_heads, n_levels, n_points)
                   for k in jax.random.split(k_par, num_layers)]

    def run(use_pallas, padding_mask):
        return deformable_transformer_encoder(
            params_list, src, spatial_shapes, spatial_shapes_arr, level_start_index,
            valid_ratios, pos=pos, padding_mask=padding_mask, use_pallas=use_pallas,
            n_heads=n_heads, n_points=n_points)

    # Case 1: no padding mask.
    out = jax.block_until_ready(run(True, None))
    ref = jax.block_until_ready(run(False, None))
    assert out.shape == (B, Len, d_model)
    assert bool(jnp.all(jnp.isfinite(out)))
    max_err = float(jnp.max(jnp.abs(out - ref)))
    assert max_err < 7.5e-2, f"mismatch vs reference (no mask): {max_err}"

    # Case 2: with a key-padding mask (exercises the fused masking path).
    pm = jnp.zeros((B, Len), jnp.bool_).at[1, -40:].set(True)
    out_m = jax.block_until_ready(run(True, pm))
    ref_m = jax.block_until_ready(run(False, pm))
    assert bool(jnp.all(jnp.isfinite(out_m)))
    max_err_m = float(jnp.max(jnp.abs(out_m - ref_m)))
    assert max_err_m < 7.5e-2, f"mismatch vs reference (mask): {max_err_m}"

    print("KERNEL_OK")
</pallas_src>

<mosaic_0001>
module attributes {stable_mosaic.version = 11 : i64} {
  func.func @_proj_kernel(%arg0: i32, %arg1: memref<128x32xbf16, #tpu.memory_space<vmem>>, %arg2: memref<128x32xbf16, #tpu.memory_space<vmem>>, %arg3: memref<32x32xbf16, #tpu.memory_space<vmem>>, %arg4: memref<1x32xf32, #tpu.memory_space<vmem>>, %arg5: memref<32x128xbf16, #tpu.memory_space<vmem>>, %arg6: memref<1x128xf32, #tpu.memory_space<vmem>>, %arg7: memref<128x32xbf16, #tpu.memory_space<vmem>>, %arg8: memref<128x128xbf16, #tpu.memory_space<vmem>>) attributes {dimension_semantics = [#tpu.dimension_semantics<parallel>], iteration_bounds = array<i64: 6>, scalar_prefetch = 0 : i64, scratch_operands = 0 : i64, tpu.core_type = #tpu.core_type<tc>, window_params = [{transform_indices = @transform_0, window_bounds = array<i64: 128, 32>}, {transform_indices = @transform_1, window_bounds = array<i64: 128, 32>}, {pipeline_mode = #tpu.pipeline_mode<synchronous>, transform_indices = @transform_2, window_bounds = array<i64: 32, 32>}, {pipeline_mode = #tpu.pipeline_mode<synchronous>, transform_indices = @transform_3, window_bounds = array<i64: 1, 32>}, {pipeline_mode = #tpu.pipeline_mode<synchronous>, transform_indices = @transform_4, window_bounds = array<i64: 32, 128>}, {pipeline_mode = #tpu.pipeline_mode<synchronous>, transform_indices = @transform_5, window_bounds = array<i64: 1, 128>}, {transform_indices = @transform_6, window_bounds = array<i64: 128, 32>}, {transform_indices = @transform_7, window_bounds = array<i64: 128, 128>}]} {
    %c0 = arith.constant 0 : index
    %c0_0 = arith.constant 0 : index
    %0 = vector.load %arg1[%c0, %c0_0] : memref<128x32xbf16, #tpu.memory_space<vmem>>, vector<128x32xbf16>
    %1 = arith.extf %0 : vector<128x32xbf16> to vector<128x32xf32>
    %c0_1 = arith.constant 0 : index
    %c0_2 = arith.constant 0 : index
    %2 = vector.load %arg2[%c0_1, %c0_2] : memref<128x32xbf16, #tpu.memory_space<vmem>>, vector<128x32xbf16>
    %3 = arith.extf %2 : vector<128x32xbf16> to vector<128x32xf32>
    %4 = arith.addf %1, %3 : vector<128x32xf32>
    %5 = arith.truncf %4 : vector<128x32xf32> to vector<128x32xbf16>
    %c0_3 = arith.constant 0 : index
    %c0_4 = arith.constant 0 : index
    %6 = vector.load %arg3[%c0_3, %c0_4] : memref<32x32xbf16, #tpu.memory_space<vmem>>, vector<32x32xbf16>
    %cst = arith.constant dense<0.000000e+00> : vector<128x32xf32>
    %7 = tpu.matmul %0, %6, %cst {dimension_numbers = #tpu.dot_dimension_numbers<[1], [0], [0], [1], [0, 0, 1, 1], [], []>} : vector<128x32xbf16>, vector<32x32xbf16>, vector<128x32xf32> -> vector<128x32xf32>
    %c0_5 = arith.constant 0 : index
    %c0_6 = arith.constant 0 : index
    %8 = vector.load %arg4[%c0_5, %c0_6] : memref<1x32xf32, #tpu.memory_space<vmem>>, vector<1x32xf32>
    %9 = vector.broadcast %8 : vector<1x32xf32> to vector<128x32xf32>
    %10 = arith.addf %7, %9 : vector<128x32xf32>
    %c0_7 = arith.constant 0 : index
    %c0_8 = arith.constant 0 : index
    %11 = vector.load %arg5[%c0_7, %c0_8] : memref<32x128xbf16, #tpu.memory_space<vmem>>, vector<32x128xbf16>
    %cst_9 = arith.constant dense<0.000000e+00> : vector<128x128xf32>
    %12 = tpu.matmul %5, %11, %cst_9 {dimension_numbers = #tpu.dot_dimension_numbers<[1], [0], [0], [1], [0, 0, 1, 1], [], []>} : vector<128x32xbf16>, vector<32x128xbf16>, vector<128x128xf32> -> vector<128x128xf32>
    %c0_10 = arith.constant 0 : index
    %c0_11 = arith.constant 0 : index
    %13 = vector.load %arg6[%c0_10, %c0_11] : memref<1x128xf32, #tpu.memory_space<vmem>>, vector<1x128xf32>
    %14 = vector.broadcast %13 : vector<1x128xf32> to vector<128x128xf32>
    %15 = arith.addf %12, %14 : vector<128x128xf32>
    %16 = arith.truncf %10 : vector<128x32xf32> to vector<128x32xbf16>
    %c0_12 = arith.constant 0 : index
    %c0_13 = arith.constant 0 : index
    %17 = vector.load %arg7[%c0_12, %c0_13] : memref<128x32xbf16, #tpu.memory_space<vmem>>, vector<128x32xbf16>
    tpu.vector_store %arg7[%c0_12, %c0_13], %16 {strides = array<i32>} : memref<128x32xbf16, #tpu.memory_space<vmem>>, vector<128x32xbf16>,
    %18 = arith.truncf %15 : vector<128x128xf32> to vector<128x128xbf16>
    %c0_14 = arith.constant 0 : index
    %c0_15 = arith.constant 0 : index
    %19 = vector.load %arg8[%c0_14, %c0_15] : memref<128x128xbf16, #tpu.memory_space<vmem>>, vector<128x128xbf16>
    tpu.vector_store %arg8[%c0_14, %c0_15], %18 {strides = array<i32>} : memref<128x128xbf16, #tpu.memory_space<vmem>>, vector<128x128xbf16>,
    return
  }
  func.func @transform_0(%arg0: i32) -> (i32, i32) {
    %c0_i32 = arith.constant 0 : i32
    %c0_i32_0 = arith.constant 0 : i32
    return %arg0, %c0_i32 : i32, i32
  }
  func.func @transform_1(%arg0: i32) -> (i32, i32) {
    %c0_i32 = arith.constant 0 : i32
    %c0_i32_0 = arith.constant 0 : i32
    return %arg0, %c0_i32 : i32, i32
  }
  func.func @transform_2(%arg0: i32) -> (i32, i32) {
    %c0_i32 = arith.constant 0 : i32
    %c0_i32_0 = arith.constant 0 : i32
    %c0_i32_1 = arith.constant 0 : i32
    return %c0_i32, %c0_i32_0 : i32, i32
  }
  func.func @transform_3(%arg0: i32) -> (i32, i32) {
    %c0_i32 = arith.constant 0 : i32
    %c0_i32_0 = arith.constant 0 : i32
    %c0_i32_1 = arith.constant 0 : i32
    return %c0_i32, %c0_i32_0 : i32, i32
  }
  func.func @transform_4(%arg0: i32) -> (i32, i32) {
    %c0_i32 = arith.constant 0 : i32
    %c0_i32_0 = arith.constant 0 : i32
    %c0_i32_1 = arith.constant 0 : i32
    return %c0_i32, %c0_i32_0 : i32, i32
  }
  func.func @transform_5(%arg0: i32) -> (i32, i32) {
    %c0_i32 = arith.constant 0 : i32
    %c0_i32_0 = arith.constant 0 : i32
    %c0_i32_1 = arith.constant 0 : i32
    return %c0_i32, %c0_i32_0 : i32, i32
  }
  func.func @transform_6(%arg0: i32) -> (i32, i32) {
    %c0_i32 = arith.constant 0 : i32
    %c0_i32_0 = arith.constant 0 : i32
    return %arg0, %c0_i32 : i32, i32
  }
  func.func @transform_7(%arg0: i32) -> (i32, i32) {
    %c0_i32 = arith.constant 0 : i32
    %c0_i32_0 = arith.constant 0 : i32
    return %arg0, %c0_i32 : i32, i32
  }
}

</mosaic_0001>

<llo_original>
// kernel: tpu_custom_call.1
$region0: #{tpu_custom_call.1}
  #allocation0 [shape = 'u32[]', space=smem, size = 0x4, offset = 0x4, fixed_abs, tag = 'smem constant byte address 0x4 - core index']
  #allocation1 [shape = 'u32[144,128]{1,0:T(1,128)}', space=vmem, size = 0x12000, scoped, tag = 'internal scratch']
  %s0 = inlined_call_operand.vmem [shape: bf16[768,32], index: 0, kind: input, shape index: {}]
  %s1 = inlined_call_operand.vmem [shape: bf16[768,32], index: 1, kind: input, shape index: {}]
  %s2 = inlined_call_operand.vmem [shape: bf16[32,32], index: 2, kind: input, shape index: {}]
  %s3 = inlined_call_operand.vmem [shape: f32[1,32], index: 3, kind: input, shape index: {}]
  %s4 = inlined_call_operand.vmem [shape: bf16[32,128], index: 4, kind: input, shape index: {}]
  %s5 = inlined_call_operand.vmem [shape: f32[1,128], index: 5, kind: input, shape index: {}]
  %s6 = inlined_call_operand.vmem [shape: bf16[768,32], index: 6, kind: output, shape index: {0}]
  %s7 = inlined_call_operand.hbm [shape: bf16[768,128], index: 7, kind: output, shape index: {1}]
  %8 = xla_tuple %s6, %s7
  %s9 = sld [smem:[#allocation0]]
  $region65: #{tpu_custom_call.1} parent=0
    _
  %s11 = ssub.s32 1, %s9
  %s12 = scalar_select 0, %s11, %s9
  $region1: #{tpu_custom_call.1} parent=0
    #allocation2 [shape = 'u8[65536]{0}', space=vmem, size = 0x10000, scoped, tag = 'output window, operand 1']
    #allocation3 [shape = 's32[2]{0}', space=sflag, size = 0x8, scoped, tag = 'scoped memory for tpu_custom_call.1']
    %13 = vsyncpa [#allocation3], 0
    %s14 = scalar_lea.sflag [#allocation3], 1
    %15 = vsyncpa %s14, 0
    loop: start=0, step=1, limit=8
    $region2: #{tpu_custom_call.1} parent=1 // loop_pre_header
      _
    $region3: #{tpu_custom_call.1} parent=1 // loop_header
      %s17 = sphi 0, %s21
      %p18 = scmp.ge.s32.totalorder %s17, 8
      %s27 = sphi 0, %s29
      %s30 = sphi 0, %s27
      %s31 = sphi 0, %s30
      %s47 = sphi 0, %s31
      %s53 = sphi 0, %s55
      %s56 = sphi 0, %s53
      %s57 = sphi 0, %s56
      %s73 = sphi 0, %s57
      %s77 = sphi 0, %s77
      %s79 = sphi 0, %s77
      %s80 = sphi 0, %s79
      %s94 = sphi 0, %s80
      %s98 = sphi 0, %s98
      %s100 = sphi 0, %s98
      %s101 = sphi 0, %s100
      %s115 = sphi 0, %s101
      %s119 = sphi 0, %s119
      %s121 = sphi 0, %s119
      %s122 = sphi 0, %s121
      %s136 = sphi 0, %s122
      %s140 = sphi 0, %s140
      %s142 = sphi 0, %s140
      %s143 = sphi 0, %s142
      %s157 = sphi 0, %s143
      %s163 = sphi 0, %s165
      %s166 = sphi 0, %s163
      %s167 = sphi 0, %s166
      %s183 = sphi 0, %s167
      %s189 = sphi 0, %s191
      %s192 = sphi 0, %s189
      %s193 = sphi 0, %s192
      %s209 = sphi 0, %s193
    $region4: #{tpu_custom_call.1} parent=1 // loop_header_branch
      %20 = sbr.rel (%p18) target = $region8
    $region5: #{tpu_custom_call.1} parent=1 // loop_body
      %s22 = ssub.s32 %s17, 1
      %s23 = ssub.s32 %s17, 2
      %s24 = sadd.s32 %s17, 1
      %s25 = ssub.s32 %s17, %s24
      %p26 = scmp.eq.s32.totalorder %s25, 0
      %s28 = sadd.s32 %s27, 1
      %s29 = scalar_select %p26, %s27, %s28
      %p32 = pneg %p26
      %p33 = scmp.eq.s32.totalorder %s17, 5
      %p34 = por %p32, %p33
      %p35 = scmp.ne.s32.totalorder %s27, %s30
      %p36 = scmp.eq.s32.totalorder %s17, 0
      %p37 = por %p35, %p36
      %p38 = scmp.ne.s32.totalorder %s27, %s30
      %p39 = scmp.eq.s32.totalorder %s22, 5
      %p40 = por %p38, %p39
      %p41 = scmp.ne.s32.totalorder %s30, %s31
      %p42 = scmp.eq.s32.totalorder %s22, 0
      %p43 = por %p41, %p42
      %p44 = scmp.ne.s32.totalorder %s30, %s31
      %p45 = scmp.eq.s32.totalorder %s23, 5
      %p46 = por %p44, %p45
      %p48 = scmp.ne.s32.totalorder %s31, %s47
      %p49 = scmp.eq.s32.totalorder %s23, 0
      %p50 = por %p48, %p49
      %s51 = ssub.s32 %s17, %s24
      %p52 = scmp.eq.s32.totalorder %s51, 0
      %s54 = sadd.s32 %s53, 1
      %s55 = scalar_select %p52, %s53, %s54
      %p58 = pneg %p52
      %p59 = scmp.eq.s32.totalorder %s17, 5
      %p60 = por %p58, %p59
      %p61 = scmp.ne.s32.totalorder %s53, %s56
      %p62 = scmp.eq.s32.totalorder %s17, 0
      %p63 = por %p61, %p62
      %p64 = scmp.ne.s32.totalorder %s53, %s56
      %p65 = scmp.eq.s32.totalorder %s22, 5
      %p66 = por %p64, %p65
      %p67 = scmp.ne.s32.totalorder %s56, %s57
      %p68 = scmp.eq.s32.totalorder %s22, 0
      %p69 = por %p67, %p68
      %p70 = scmp.ne.s32.totalorder %s56, %s57
      %p71 = scmp.eq.s32.totalorder %s23, 5
      %p72 = por %p70, %p71
      %p74 = scmp.ne.s32.totalorder %s57, %s73
      %p75 = scmp.eq.s32.totalorder %s23, 0
      %p76 = por %p74, %p75
      %s78 = sadd.s32 %s77, 1
      %p81 = scmp.eq.s32.totalorder %s17, 5
      %p82 = scmp.ne.s32.totalorder %s77, %s79
      %p83 = scmp.eq.s32.totalorder %s17, 0
      %p84 = por %p82, %p83
      %p85 = scmp.ne.s32.totalorder %s77, %s79
      %p86 = scmp.eq.s32.totalorder %s22, 5
      %p87 = por %p85, %p86
      %p88 = scmp.ne.s32.totalorder %s79, %s80
      %p89 = scmp.eq.s32.totalorder %s22, 0
      %p90 = por %p88, %p89
      %p91 = scmp.ne.s32.totalorder %s79, %s80
      %p92 = scmp.eq.s32.totalorder %s23, 5
      %p93 = por %p91, %p92
      %p95 = scmp.ne.s32.totalorder %s80, %s94
      %p96 = scmp.eq.s32.totalorder %s23, 0
      %p97 = por %p95, %p96
      %s99 = sadd.s32 %s98, 1
      %p102 = scmp.eq.s32.totalorder %s17, 5
      %p103 = scmp.ne.s32.totalorder %s98, %s100
      %p104 = scmp.eq.s32.totalorder %s17, 0
      %p105 = por %p103, %p104
      %p106 = scmp.ne.s32.totalorder %s98, %s100
      %p107 = scmp.eq.s32.totalorder %s22, 5
      %p108 = por %p106, %p107
      %p109 = scmp.ne.s32.totalorder %s100, %s101
      %p110 = scmp.eq.s32.totalorder %s22, 0
      %p111 = por %p109, %p110
      %p112 = scmp.ne.s32.totalorder %s100, %s101
      %p113 = scmp.eq.s32.totalorder %s23, 5
      %p114 = por %p112, %p113
      %p116 = scmp.ne.s32.totalorder %s101, %s115
      %p117 = scmp.eq.s32.totalorder %s23, 0
      %p118 = por %p116, %p117
      %s120 = sadd.s32 %s119, 1
      %p123 = scmp.eq.s32.totalorder %s17, 5
      %p124 = scmp.ne.s32.totalorder %s119, %s121
      %p125 = scmp.eq.s32.totalorder %s17, 0
      %p126 = por %p124, %p125
      %p127 = scmp.ne.s32.totalorder %s119, %s121
      %p128 = scmp.eq.s32.totalorder %s22, 5
      %p129 = por %p127, %p128
      %p130 = scmp.ne.s32.totalorder %s121, %s122
      %p131 = scmp.eq.s32.totalorder %s22, 0
      %p132 = por %p130, %p131
      %p133 = scmp.ne.s32.totalorder %s121, %s122
      %p134 = scmp.eq.s32.totalorder %s23, 5
      %p135 = por %p133, %p134
      %p137 = scmp.ne.s32.totalorder %s122, %s136
      %p138 = scmp.eq.s32.totalorder %s23, 0
      %p139 = por %p137, %p138
      %s141 = sadd.s32 %s140, 1
      %p144 = scmp.eq.s32.totalorder %s17, 5
      %p145 = scmp.ne.s32.totalorder %s140, %s142
      %p146 = scmp.eq.s32.totalorder %s17, 0
      %p147 = por %p145, %p146
      %p148 = scmp.ne.s32.totalorder %s140, %s142
      %p149 = scmp.eq.s32.totalorder %s22, 5
      %p150 = por %p148, %p149
      %p151 = scmp.ne.s32.totalorder %s142, %s143
      %p152 = scmp.eq.s32.totalorder %s22, 0
      %p153 = por %p151, %p152
      %p154 = scmp.ne.s32.totalorder %s142, %s143
      %p155 = scmp.eq.s32.totalorder %s23, 5
      %p156 = por %p154, %p155
      %p158 = scmp.ne.s32.totalorder %s143, %s157
      %p159 = scmp.eq.s32.totalorder %s23, 0
      %p160 = por %p158, %p159
      %s161 = ssub.s32 %s17, %s24
      %p162 = scmp.eq.s32.totalorder %s161, 0
      %s164 = sadd.s32 %s163, 1
      %s165 = scalar_select %p162, %s163, %s164
      %p168 = pneg %p162
      %p169 = scmp.eq.s32.totalorder %s17, 5
      %p170 = por %p168, %p169
      %p171 = scmp.ne.s32.totalorder %s163, %s166
      %p172 = scmp.eq.s32.totalorder %s17, 0
      %p173 = por %p171, %p172
      %p174 = scmp.ne.s32.totalorder %s163, %s166
      %p175 = scmp.eq.s32.totalorder %s22, 5
      %p176 = por %p174, %p175
      %p177 = scmp.ne.s32.totalorder %s166, %s167
      %p178 = scmp.eq.s32.totalorder %s22, 0
      %p179 = por %p177, %p178
      %p180 = scmp.ne.s32.totalorder %s166, %s167
      %p181 = scmp.eq.s32.totalorder %s23, 5
      %p182 = por %p180, %p181
      %p184 = scmp.ne.s32.totalorder %s167, %s183
      %p185 = scmp.eq.s32.totalorder %s23, 0
      %p186 = por %p184, %p185
      %s187 = ssub.s32 %s17, %s24
      %p188 = scmp.eq.s32.totalorder %s187, 0
      %s190 = sadd.s32 %s189, 1
      %s191 = scalar_select %p188, %s189, %s190
      %p194 = pneg %p188
      %p195 = scmp.eq.s32.totalorder %s17, 5
      %p196 = por %p194, %p195
      %p197 = scmp.ne.s32.totalorder %s189, %s192
      %p198 = scmp.eq.s32.totalorder %s17, 0
      %p199 = por %p197, %p198
      %p200 = scmp.ne.s32.totalorder %s189, %s192
      %p201 = scmp.eq.s32.totalorder %s22, 5
      %p202 = por %p200, %p201
      %p203 = scmp.ne.s32.totalorder %s192, %s193
      %p204 = scmp.eq.s32.totalorder %s22, 0
      %p205 = por %p203, %p204
      %p206 = scmp.ne.s32.totalorder %s192, %s193
      %p207 = scmp.eq.s32.totalorder %s23, 5
      %p208 = por %p206, %p207
      %p210 = scmp.ne.s32.totalorder %s193, %s209
      %p211 = scmp.eq.s32.totalorder %s23, 0
      %p212 = por %p210, %p211
      %p213 = scmp.le.s32.totalorder 1, %s17
      %p214 = scmp.lt.s32.totalorder %s17, 7
      %p215 = pnand %p213, %p214
      %p216 = pneg %p215
      // Predicated region
      $region9: #{tpu_custom_call.1} parent=5 // pred_check
        _
      $region10: #{tpu_custom_call.1} parent=5 // pred_check_branch
        %218 = sbr.rel (%p215) target = $region12
      $region11: #{tpu_custom_call.1} parent=5 // pred_region
        %s219 = ssub.s32 %s17, 1
        // Predicated region
        $region13: #{tpu_custom_call.1} parent=11 // pred_check
          %p220 = pneg %p90
        $region14: #{tpu_custom_call.1} parent=11 // pred_check_branch
          %222 = sbr.rel (%p220) target = $region16
        $region15: #{tpu_custom_call.1} parent=11 // pred_region
          _
        $region16: #{tpu_custom_call.1} parent=11 // pred_fallthru
          _
        // Predicated region
        $region17: #{tpu_custom_call.1} parent=11 // pred_check
          %p223 = pneg %p111
        $region18: #{tpu_custom_call.1} parent=11 // pred_check_branch
          %225 = sbr.rel (%p223) target = $region20
        $region19: #{tpu_custom_call.1} parent=11 // pred_region
          _
        $region20: #{tpu_custom_call.1} parent=11 // pred_fallthru
          _
        // Predicated region
        $region21: #{tpu_custom_call.1} parent=11 // pred_check
          %p226 = pneg %p132
        $region22: #{tpu_custom_call.1} parent=11 // pred_check_branch
          %228 = sbr.rel (%p226) target = $region24
        $region23: #{tpu_custom_call.1} parent=11 // pred_region
          _
        $region24: #{tpu_custom_call.1} parent=11 // pred_fallthru
          _
        // Predicated region
        $region25: #{tpu_custom_call.1} parent=11 // pred_check
          %p229 = pneg %p153
        $region26: #{tpu_custom_call.1} parent=11 // pred_check_branch
          %231 = sbr.rel (%p229) target = $region28
        $region27: #{tpu_custom_call.1} parent=11 // pred_region
          _
        $region28: #{tpu_custom_call.1} parent=11 // pred_fallthru
          _
      $region12: #{tpu_custom_call.1} parent=5 // pred_fallthru
        _
      %p232 = scmp.lt.s32.totalorder %s17, 6
      // Predicated region
      $region29: #{tpu_custom_call.1} parent=5 // pred_check
        %p233 = pneg %p232
      $region30: #{tpu_custom_call.1} parent=5 // pred_check_branch
        %235 = sbr.rel (%p233) target = $region32
      $region31: #{tpu_custom_call.1} parent=5 // pred_region
        // Predicated region
        $region33: #{tpu_custom_call.1} parent=31 // pred_check
          %p236 = pneg %p37
        $region34: #{tpu_custom_call.1} parent=31 // pred_check_branch
          %238 = sbr.rel (%p236) target = $region36
        $region35: #{tpu_custom_call.1} parent=31 // pred_region
          %s239 = smul.u32 16, %s17
          %p240 = scmp.lt.s32.totalorder %s239, 95
          %s241 = scalar_select %p240, %s239, 95
          %s242 = smul.addr %s241, 4
          %s243 = scalar_lea.vmem %s0, %s242
          %s244 = smul.u32 16, %s17
        $region36: #{tpu_custom_call.1} parent=31 // pred_fallthru
          _
        // Predicated region
        $region37: #{tpu_custom_call.1} parent=31 // pred_check
          %p245 = pneg %p63
        $region38: #{tpu_custom_call.1} parent=31 // pred_check_branch
          %247 = sbr.rel (%p245) target = $region40
        $region39: #{tpu_custom_call.1} parent=31 // pred_region
          %s248 = smul.u32 16, %s17
          %p249 = scmp.lt.s32.totalorder %s248, 95
          %s250 = scalar_select %p249, %s248, 95
          %s251 = smul.addr %s250, 4
          %s252 = scalar_lea.vmem %s1, %s251
          %s253 = smul.u32 16, %s17
        $region40: #{tpu_custom_call.1} parent=31 // pred_fallthru
          _
      $region32: #{tpu_custom_call.1} parent=5 // pred_fallthru
        _
      %p254 = scmp.le.s32.totalorder 1, %s17
      %p255 = scmp.lt.s32.totalorder %s17, 7
      %p256 = pnand %p254, %p255
      %p257 = pneg %p256
      // Predicated region
      $region41: #{tpu_custom_call.1} parent=5 // pred_check
        _
      $region42: #{tpu_custom_call.1} parent=5 // pred_check_branch
        %259 = sbr.rel (%p256) target = $region44
      $region43: #{tpu_custom_call.1} parent=5 // pred_region
        %s260 = ssub.s32 %s17, 1
        %s261 = smul.u32 16, %s22
        %p262 = scmp.lt.s32.totalorder %s261, 95
        %s263 = scalar_select %p262, %s261, 95
        %s264 = smul.addr %s263, 4
        %s265 = scalar_lea.vmem %s0, %s264
        %p266 = pneg %p43
        %p267 = pneg %p40
        %s268 = smul.u32 16, %s22
        %p269 = scmp.lt.s32.totalorder %s268, 95
        %s270 = scalar_select %p269, %s268, 95
        %s271 = smul.addr %s270, 4
        %s272 = scalar_lea.vmem %s1, %s271
        %p273 = pneg %p69
        %p274 = pneg %p66
        %p275 = pneg %p90
        %p276 = pneg %p87
        %p277 = pneg %p111
        %p278 = pneg %p108
        %p279 = pneg %p132
        %p280 = pneg %p129
        %p281 = pneg %p153
        %p282 = pneg %p150
        %p283 = pneg %p179
        %p284 = pneg %p176
        %s285 = smul.u32 16, %s22
        %p286 = scmp.lt.s32.totalorder %s285, 95
        %s287 = scalar_select %p286, %s285, 95
        %s288 = smul.addr %s287, 4
        %s289 = scalar_lea.vmem %s6, %s288
        %p290 = pneg %p205
        %p291 = pneg %p202
        %s292 = sand.u32 %s192, 1
        %s293 = scalar_lea.sflag [#allocation3], %s292
        %s294 = sand.u32 %s192, 1
        %s295 = smul.addr %s294, 64
        %s296 = scalar_lea.vmem [#allocation2], %s295
        %s297 = smul.u32 16, %s22
        %p298 = scmp.lt.s32.totalorder %s297, 95
        %s299 = scalar_select %p298, %s297, 95
        %s300 = smul.addr %s299, 4
        %s301 = scalar_lea.vmem %s0, %s300
        %s302 = smul.u32 16, %s22
        %s303 = smul.u32 16, %s22
        %p304 = scmp.lt.s32.totalorder %s303, 95
        %s305 = scalar_select %p304, %s303, 95
        %s306 = smul.addr %s305, 4
        %s307 = scalar_lea.vmem %s1, %s306
        %s308 = smul.u32 16, %s22
        %s309 = smul.u32 16, %s22
        %p310 = scmp.lt.s32.totalorder %s309, 95
        %s311 = scalar_select %p310, %s309, 95
        %s312 = smul.addr %s311, 4
        %s313 = scalar_lea.vmem %s6, %s312
        %s314 = smul.u32 16, %s22
        %s315 = smul.u32 16, %s22
        %v317 = vld [vmem:[%s301] sm:$0xf]
        %v318 = vld [vmem:[%s301 + $0x4] sm:$0xf]
        %v319 = vld [vmem:[%s301 + $0x8] sm:$0xf]
        %v320 = vld [vmem:[%s301 + $0xc] sm:$0xf]
        %v321 = vld [vmem:[%s301 + $0x10] sm:$0xf]
        %v322 = vld [vmem:[%s301 + $0x14] sm:$0xf]
        %v323 = vld [vmem:[%s301 + $0x18] sm:$0xf]
        %v324 = vld [vmem:[%s301 + $0x1c] sm:$0xf]
        %v325 = vld [vmem:[%s301 + $0x20] sm:$0xf]
        %v326 = vld [vmem:[%s301 + $0x24] sm:$0xf]
        %v327 = vld [vmem:[%s301 + $0x28] sm:$0xf]
        %v328 = vld [vmem:[%s301 + $0x2c] sm:$0xf]
        %v329 = vld [vmem:[%s301 + $0x30] sm:$0xf]
        %v330 = vld [vmem:[%s301 + $0x34] sm:$0xf]
        %v331 = vld [vmem:[%s301 + $0x38] sm:$0xf]
        %v332 = vld [vmem:[%s301 + $0x3c] sm:$0xf]
        %v333 = vunpack.c.l.bf16 %v317
        %v334 = vunpack.c.l.bf16 %v318
        %v335 = vunpack.c.l.bf16 %v319
        %v336 = vunpack.c.l.bf16 %v320
        %v337 = vunpack.c.l.bf16 %v321
        %v338 = vunpack.c.l.bf16 %v322
        %v339 = vunpack.c.l.bf16 %v323
        %v340 = vunpack.c.l.bf16 %v324
        %v341 = vunpack.c.l.bf16 %v325
        %v342 = vunpack.c.l.bf16 %v326
        %v343 = vunpack.c.l.bf16 %v327
        %v344 = vunpack.c.l.bf16 %v328
        %v345 = vunpack.c.l.bf16 %v329
        %v346 = vunpack.c.l.bf16 %v330
        %v347 = vunpack.c.l.bf16 %v331
        %v348 = vunpack.c.l.bf16 %v332
        %v349 = vld [vmem:[%s307] sm:$0xf]
        %v350 = vld [vmem:[%s307 + $0x4] sm:$0xf]
        %v351 = vld [vmem:[%s307 + $0x8] sm:$0xf]
        %v352 = vld [vmem:[%s307 + $0xc] sm:$0xf]
        %v353 = vld [vmem:[%s307 + $0x10] sm:$0xf]
        %v354 = vld [vmem:[%s307 + $0x14] sm:$0xf]
        %v355 = vld [vmem:[%s307 + $0x18] sm:$0xf]
        %v356 = vld [vmem:[%s307 + $0x1c] sm:$0xf]
        %v357 = vld [vmem:[%s307 + $0x20] sm:$0xf]
        %v358 = vld [vmem:[%s307 + $0x24] sm:$0xf]
        %v359 = vld [vmem:[%s307 + $0x28] sm:$0xf]
        %v360 = vld [vmem:[%s307 + $0x2c] sm:$0xf]
        %v361 = vld [vmem:[%s307 + $0x30] sm:$0xf]
        %v362 = vld [vmem:[%s307 + $0x34] sm:$0xf]
        %v363 = vld [vmem:[%s307 + $0x38] sm:$0xf]
        %v364 = vld [vmem:[%s307 + $0x3c] sm:$0xf]
        %v365 = vunpack.c.l.bf16 %v349
        %v366 = vunpack.c.l.bf16 %v350
        %v367 = vunpack.c.l.bf16 %v351
        %v368 = vunpack.c.l.bf16 %v352
        %v369 = vunpack.c.l.bf16 %v353
        %v370 = vunpack.c.l.bf16 %v354
        %v371 = vunpack.c.l.bf16 %v355
        %v372 = vunpack.c.l.bf16 %v356
        %v373 = vunpack.c.l.bf16 %v357
        %v374 = vunpack.c.l.bf16 %v358
        %v375 = vunpack.c.l.bf16 %v359
        %v376 = vunpack.c.l.bf16 %v360
        %v377 = vunpack.c.l.bf16 %v361
        %v378 = vunpack.c.l.bf16 %v362
        %v379 = vunpack.c.l.bf16 %v363
        %v380 = vunpack.c.l.bf16 %v364
        %v381 = vadd.f32 %v333, %v365
        %v382 = vadd.f32 %v334, %v366
        %v383 = vadd.f32 %v335, %v367
        %v384 = vadd.f32 %v336, %v368
        %v385 = vadd.f32 %v337, %v369
        %v386 = vadd.f32 %v338, %v370
        %v387 = vadd.f32 %v339, %v371
        %v388 = vadd.f32 %v340, %v372
        %v389 = vadd.f32 %v341, %v373
        %v390 = vadd.f32 %v342, %v374
        %v391 = vadd.f32 %v343, %v375
        %v392 = vadd.f32 %v344, %v376
        %v393 = vadd.f32 %v345, %v377
        %v394 = vadd.f32 %v346, %v378
        %v395 = vadd.f32 %v347, %v379
        %v396 = vadd.f32 %v348, %v380
        %v397 = vpack.c.bf16 %v382, %v381
        %v398 = vpack.c.bf16 %v384, %v383
        %v399 = vpack.c.bf16 %v386, %v385
        %v400 = vpack.c.bf16 %v388, %v387
        %v401 = vpack.c.bf16 %v390, %v389
        %v402 = vpack.c.bf16 %v392, %v391
        %v403 = vpack.c.bf16 %v394, %v393
        %v404 = vpack.c.bf16 %v396, %v395
        %v405 = vld [vmem:[%s2] sm:$0xf]
        %v406 = vld [vmem:[%s2 + $0x4] sm:$0xf]
        %v407 = vld [vmem:[%s2 + $0x8] sm:$0xf]
        %v408 = vld [vmem:[%s2 + $0xc] sm:$0xf]
        %v409 = vld [vmem:[%s3] sm:$0x1]
        %v411 = vlaneseq
        %v412 = vshrl.u32 %v411, 7
        %v413 = vsub.s32 0, %v412
        %v414 = vrot.slane %v409, %v413
        %v432 = vunpack.c.l.b16 %v317
        %v433 = vunpack.c.l.b16 %v318
        %v434 = vunpack.c.l.b16 %v319
        %v435 = vunpack.c.l.b16 %v320
        %v436 = vunpack.c.l.b16 %v321
        %v437 = vunpack.c.l.b16 %v322
        %v438 = vunpack.c.l.b16 %v323
        %v439 = vunpack.c.l.b16 %v324
        %v440 = vunpack.c.l.b16 %v325
        %v441 = vunpack.c.l.b16 %v326
        %v442 = vunpack.c.l.b16 %v327
        %v443 = vunpack.c.l.b16 %v328
        %v444 = vunpack.c.l.b16 %v329
        %v445 = vunpack.c.l.b16 %v330
        %v446 = vunpack.c.l.b16 %v331
        %v447 = vunpack.c.l.b16 %v332
        %v448 = vpack.c.b16 %v433, %v432
        %v449 = vpack.c.b16 %v435, %v434
        %v450 = vpack.c.b16 %v437, %v436
        %v451 = vpack.c.b16 %v439, %v438
        %v452 = vpack.c.b16 %v441, %v440
        %v453 = vpack.c.b16 %v443, %v442
        %v454 = vpack.c.b16 %v445, %v444
        %v455 = vpack.c.b16 %v447, %v446
        %v460 = vunpack.c.l.b16 %v405
        %v461 = vunpack.c.l.b16 %v406
        %v462 = vunpack.c.l.b16 %v407
        %v463 = vunpack.c.l.b16 %v408
        %v464 = vpack.c.b16 %v461, %v460
        %v465 = vpack.c.b16 %v463, %v462
        %vm468 = vcmask 261120
        %v470 = vsel %vm468, %v448, 0
        %v473 = vsel %vm468, %v449, 0
        %v476 = vsel %vm468, %v450, 0
        %v479 = vsel %vm468, %v451, 0
        %v482 = vsel %vm468, %v452, 0
        %v485 = vsel %vm468, %v453, 0
        %v488 = vsel %vm468, %v454, 0
        %v491 = vsel %vm468, %v455, 0
        %493 = vmatprep.subr.bf16.mxu0 0
        %494 = vmatpush1.bf16.msra.mxu0 0
        %495 = vmatprep.subr.bf16.mxu0 0
        %496 = vmatpush1.bf16.msra.mxu0 0
        %497 = vmatprep.subr.bf16.mxu0 0
        %498 = vmatpush1.bf16.msra.mxu0 0
        %499 = vmatprep.subr.bf16.mxu0 0
        %500 = vmatpush1.bf16.msra.mxu0 0
        %501 = vmatprep.subr.bf16.mxu0 0
        %502 = vmatpush1.bf16.msra.mxu0 0
        %503 = vmatprep.subr.bf16.mxu0 0
        %504 = vmatpush1.bf16.msra.mxu0 0
        %505 = vmatprep.subr.bf16.mxu0 0
        %506 = vmatpush1.bf16.msra.mxu0 %v465
        %507 = vmatprep.subr.bf16.mxu0 0
        %508 = vmatpush1.bf16.msra.mxu0 %v464
        %509 = vmatprep.subr.bf16.mxu0 0
        %510 = vmatpush2.bf16.msra.mxu0 0
        %511 = vmatprep.subr.bf16.mxu0 0
        %512 = vmatpush2.bf16.msra.mxu0 0
        %513 = vmatprep.subr.bf16.mxu0 0
        %514 = vmatpush2.bf16.msra.mxu0 0
        %515 = vmatprep.subr.bf16.mxu0 0
        %516 = vmatpush2.bf16.msra.mxu0 0
        %517 = vmatprep.subr.bf16.mxu0 0
        %518 = vmatpush2.bf16.msra.mxu0 0
        %519 = vmatprep.subr.bf16.mxu0 0
        %520 = vmatpush2.bf16.msra.mxu0 0
        %521 = vmatprep.subr.bf16.mxu0 0
        %522 = vmatpush2.bf16.msra.mxu0 0
        %523 = vmatprep.subr.bf16.mxu0 0
        %524 = vmatpush2.bf16.msra.mxu0 0
        %525 = vmatprep.mubr.bf16.mxu0 0
        %526 = vmatmul.mubr.bf16.gmra.mxu0 %v470
        %v527 = vpop.f32.mrf.mxu0
        %v528 = vadd.f32 %v414, %v527
        %v529 = vpop.f32.mrf.mxu0
        %v530 = vpop.f32.mrf.mxu0
        %v531 = vadd.f32 %v414, %v530
        %v532 = vpop.f32.mrf.mxu0
        %533 = vmatprep.mubr.bf16.mxu0 0
        %534 = vmatmul.mubr.bf16.gmra.mxu0 %v473
        %v535 = vpop.f32.mrf.mxu0
        %v536 = vadd.f32 %v414, %v535
        %v537 = vpop.f32.mrf.mxu0
        %v538 = vpop.f32.mrf.mxu0
        %v539 = vadd.f32 %v414, %v538
        %v540 = vpop.f32.mrf.mxu0
        %541 = vmatprep.mubr.bf16.mxu0 0
        %542 = vmatmul.mubr.bf16.gmra.mxu0 %v476
        %v543 = vpop.f32.mrf.mxu0
        %v544 = vadd.f32 %v414, %v543
        %v545 = vpop.f32.mrf.mxu0
        %v546 = vpop.f32.mrf.mxu0
        %v547 = vadd.f32 %v414, %v546
        %v548 = vpop.f32.mrf.mxu0
        %549 = vmatprep.mubr.bf16.mxu0 0
        %550 = vmatmul.mubr.bf16.gmra.mxu0 %v479
        %v551 = vpop.f32.mrf.mxu0
        %v552 = vadd.f32 %v414, %v551
        %v553 = vpop.f32.mrf.mxu0
        %v554 = vpop.f32.mrf.mxu0
        %v555 = vadd.f32 %v414, %v554
        %v556 = vpop.f32.mrf.mxu0
        %557 = vmatprep.mubr.bf16.mxu0 0
        %558 = vmatmul.mubr.bf16.gmra.mxu0 %v482
        %v559 = vpop.f32.mrf.mxu0
        %v560 = vadd.f32 %v414, %v559
        %v561 = vpop.f32.mrf.mxu0
        %v562 = vpop.f32.mrf.mxu0
        %v563 = vadd.f32 %v414, %v562
        %v564 = vpop.f32.mrf.mxu0
        %565 = vmatprep.mubr.bf16.mxu0 0
        %566 = vmatmul.mubr.bf16.gmra.mxu0 %v485
        %v567 = vpop.f32.mrf.mxu0
        %v568 = vadd.f32 %v414, %v567
        %v569 = vpop.f32.mrf.mxu0
        %v570 = vpop.f32.mrf.mxu0
        %v571 = vadd.f32 %v414, %v570
        %v572 = vpop.f32.mrf.mxu0
        %573 = vmatprep.mubr.bf16.mxu0 0
        %574 = vmatmul.mubr.bf16.gmra.mxu0 %v488
        %v575 = vpop.f32.mrf.mxu0
        %v576 = vadd.f32 %v414, %v575
        %v577 = vpop.f32.mrf.mxu0
        %v578 = vpop.f32.mrf.mxu0
        %v579 = vadd.f32 %v414, %v578
        %v580 = vpop.f32.mrf.mxu0
        %581 = vmatprep.mubr.bf16.mxu0 0
        %582 = vmatmul.mubr.bf16.gmra.mxu0 %v491
        %v583 = vpop.f32.mrf.mxu0
        %v584 = vadd.f32 %v414, %v583
        %v585 = vpop.f32.mrf.mxu0
        %v586 = vpop.f32.mrf.mxu0
        %v587 = vadd.f32 %v414, %v586
        %v588 = vpop.f32.mrf.mxu0
        %589 = vdwg.mxu0
        %v590 = vld [vmem:[%s4] sm:$0xf]
        %v591 = vld [vmem:[%s4 + $0x4] sm:$0xf]
        %v592 = vld [vmem:[%s4 + $0x8] sm:$0xf]
        %v593 = vld [vmem:[%s4 + $0xc] sm:$0xf]
        %v594 = vld [vmem:[%s5] sm:$0x1]
        %v596 = vlaneseq
        %v597 = vshrl.u32 %v596, 7
        %v598 = vsub.s32 0, %v597
        %v599 = vrot.slane %v594, %v598
        %v605 = vunpack.c.l.b16 %v590
        %v606 = vunpack.c.l.b16 %v591
        %v607 = vunpack.c.l.b16 %v592
        %v608 = vunpack.c.l.b16 %v593
        %v609 = vpack.c.b16 %v606, %v605
        %v610 = vpack.c.b16 %v608, %v607
        %v614 = vsel %vm468, %v397, 0
        %v617 = vsel %vm468, %v398, 0
        %v620 = vsel %vm468, %v399, 0
        %v623 = vsel %vm468, %v400, 0
        %v626 = vsel %vm468, %v401, 0
        %v629 = vsel %vm468, %v402, 0
        %v632 = vsel %vm468, %v403, 0
        %v635 = vsel %vm468, %v404, 0
        %637 = vmatprep.subr.bf16.mxu0 0
        %638 = vmatpush1.bf16.msra.mxu0 0
        %639 = vmatprep.subr.bf16.mxu0 0
        %640 = vmatpush1.bf16.msra.mxu0 0
        %641 = vmatprep.subr.bf16.mxu0 0
        %642 = vmatpush1.bf16.msra.mxu0 0
        %643 = vmatprep.subr.bf16.mxu0 0
        %644 = vmatpush1.bf16.msra.mxu0 0
        %645 = vmatprep.subr.bf16.mxu0 0
        %646 = vmatpush1.bf16.msra.mxu0 0
        %647 = vmatprep.subr.bf16.mxu0 0
        %648 = vmatpush1.bf16.msra.mxu0 0
        %649 = vmatprep.subr.bf16.mxu0 0
        %650 = vmatpush1.bf16.msra.mxu0 %v610
        %651 = vmatprep.subr.bf16.mxu0 0
        %652 = vmatpush1.bf16.msra.mxu0 %v609
        %653 = vmatprep.subr.bf16.mxu0 0
        %654 = vmatpush2.bf16.msra.mxu0 0
        %655 = vmatprep.subr.bf16.mxu0 0
        %656 = vmatpush2.bf16.msra.mxu0 0
        %657 = vmatprep.subr.bf16.mxu0 0
        %658 = vmatpush2.bf16.msra.mxu0 0
        %659 = vmatprep.subr.bf16.mxu0 0
        %660 = vmatpush2.bf16.msra.mxu0 0
        %661 = vmatprep.subr.bf16.mxu0 0
        %662 = vmatpush2.bf16.msra.mxu0 0
        %663 = vmatprep.subr.bf16.mxu0 0
        %664 = vmatpush2.bf16.msra.mxu0 0
        %665 = vmatprep.subr.bf16.mxu0 0
        %666 = vmatpush2.bf16.msra.mxu0 0
        %667 = vmatprep.subr.bf16.mxu0 0
        %668 = vmatpush2.bf16.msra.mxu0 0
        %669 = vmatprep.mubr.bf16.mxu0 0
        %670 = vmatmul.mubr.bf16.gmra.mxu0 %v614
        %v671 = vpop.f32.mrf.mxu0
        %v672 = vadd.f32 %v599, %v671
        %v673 = vpop.f32.mrf.mxu0
        %v674 = vpop.f32.mrf.mxu0
        %v675 = vadd.f32 %v599, %v674
        %v676 = vpop.f32.mrf.mxu0
        %677 = vmatprep.mubr.bf16.mxu0 0
        %678 = vmatmul.mubr.bf16.gmra.mxu0 %v617
        %v679 = vpop.f32.mrf.mxu0
        %v680 = vadd.f32 %v599, %v679
        %v681 = vpop.f32.mrf.mxu0
        %v682 = vpop.f32.mrf.mxu0
        %v683 = vadd.f32 %v599, %v682
        %v684 = vpop.f32.mrf.mxu0
        %685 = vmatprep.mubr.bf16.mxu0 0
        %686 = vmatmul.mubr.bf16.gmra.mxu0 %v620
        %v687 = vpop.f32.mrf.mxu0
        %v688 = vadd.f32 %v599, %v687
        %v689 = vpop.f32.mrf.mxu0
        %v690 = vpop.f32.mrf.mxu0
        %v691 = vadd.f32 %v599, %v690
        %v692 = vpop.f32.mrf.mxu0
        %693 = vmatprep.mubr.bf16.mxu0 0
        %694 = vmatmul.mubr.bf16.gmra.mxu0 %v623
        %v695 = vpop.f32.mrf.mxu0
        %v696 = vadd.f32 %v599, %v695
        %v697 = vpop.f32.mrf.mxu0
        %v698 = vpop.f32.mrf.mxu0
        %v699 = vadd.f32 %v599, %v698
        %v700 = vpop.f32.mrf.mxu0
        %701 = vmatprep.mubr.bf16.mxu0 0
        %702 = vmatmul.mubr.bf16.gmra.mxu0 %v626
        %v703 = vpop.f32.mrf.mxu0
        %v704 = vadd.f32 %v599, %v703
        %v705 = vpop.f32.mrf.mxu0
        %v706 = vpop.f32.mrf.mxu0
        %v707 = vadd.f32 %v599, %v706
        %v708 = vpop.f32.mrf.mxu0
        %709 = vmatprep.mubr.bf16.mxu0 0
        %710 = vmatmul.mubr.bf16.gmra.mxu0 %v629
        %v711 = vpop.f32.mrf.mxu0
        %v712 = vadd.f32 %v599, %v711
        %v713 = vpop.f32.mrf.mxu0
        %v714 = vpop.f32.mrf.mxu0
        %v715 = vadd.f32 %v599, %v714
        %v716 = vpop.f32.mrf.mxu0
        %717 = vmatprep.mubr.bf16.mxu0 0
        %718 = vmatmul.mubr.bf16.gmra.mxu0 %v632
        %v719 = vpop.f32.mrf.mxu0
        %v720 = vadd.f32 %v599, %v719
        %v721 = vpop.f32.mrf.mxu0
        %v722 = vpop.f32.mrf.mxu0
        %v723 = vadd.f32 %v599, %v722
        %v724 = vpop.f32.mrf.mxu0
        %725 = vmatprep.mubr.bf16.mxu0 0
        %726 = vmatmul.mubr.bf16.gmra.mxu0 %v635
        %v727 = vpop.f32.mrf.mxu0
        %v728 = vadd.f32 %v599, %v727
        %v729 = vpop.f32.mrf.mxu0
        %v730 = vpop.f32.mrf.mxu0
        %v731 = vadd.f32 %v599, %v730
        %v732 = vpop.f32.mrf.mxu0
        %733 = vdwg.mxu0
        %v734 = vpack.c.bf16 %v531, %v528
        %v735 = vpack.c.bf16 %v539, %v536
        %v736 = vpack.c.bf16 %v547, %v544
        %v737 = vpack.c.bf16 %v555, %v552
        %v738 = vpack.c.bf16 %v563, %v560
        %v739 = vpack.c.bf16 %v571, %v568
        %v740 = vpack.c.bf16 %v579, %v576
        %v741 = vpack.c.bf16 %v587, %v584
        %v750 = vunpack.c.l.b16 %v734
        %v751 = vunpack.c.h.b16 %v734
        %v752 = vunpack.c.l.b16 %v735
        %v753 = vunpack.c.h.b16 %v735
        %v754 = vunpack.c.l.b16 %v736
        %v755 = vunpack.c.h.b16 %v736
        %v756 = vunpack.c.l.b16 %v737
        %v757 = vunpack.c.h.b16 %v737
        %v758 = vunpack.c.l.b16 %v738
        %v759 = vunpack.c.h.b16 %v738
        %v760 = vunpack.c.l.b16 %v739
        %v761 = vunpack.c.h.b16 %v739
        %v762 = vunpack.c.l.b16 %v740
        %v763 = vunpack.c.h.b16 %v740
        %v764 = vunpack.c.l.b16 %v741
        %v765 = vunpack.c.h.b16 %v741
        %v766 = vpack.c.b16 %v750, %v750
        %v767 = vpack.c.b16 %v751, %v751
        %v768 = vpack.c.b16 %v752, %v752
        %v769 = vpack.c.b16 %v753, %v753
        %v770 = vpack.c.b16 %v754, %v754
        %v771 = vpack.c.b16 %v755, %v755
        %v772 = vpack.c.b16 %v756, %v756
        %v773 = vpack.c.b16 %v757, %v757
        %v774 = vpack.c.b16 %v758, %v758
        %v775 = vpack.c.b16 %v759, %v759
        %v776 = vpack.c.b16 %v760, %v760
        %v777 = vpack.c.b16 %v761, %v761
        %v778 = vpack.c.b16 %v762, %v762
        %v779 = vpack.c.b16 %v763, %v763
        %v780 = vpack.c.b16 %v764, %v764
        %v781 = vpack.c.b16 %v765, %v765
        %vm798 = vcmask 257024
        %799 = vst.msk [vmem:[%s313] sm:$0xf] %vm798, %v766
        %800 = vst.msk [vmem:[%s313 + $0x4] sm:$0xf] %vm798, %v767
        %801 = vst.msk [vmem:[%s313 + $0x8] sm:$0xf] %vm798, %v768
        %802 = vst.msk [vmem:[%s313 + $0xc] sm:$0xf] %vm798, %v769
        %803 = vst.msk [vmem:[%s313 + $0x10] sm:$0xf] %vm798, %v770
        %804 = vst.msk [vmem:[%s313 + $0x14] sm:$0xf] %vm798, %v771
        %805 = vst.msk [vmem:[%s313 + $0x18] sm:$0xf] %vm798, %v772
        %806 = vst.msk [vmem:[%s313 + $0x1c] sm:$0xf] %vm798, %v773
        %807 = vst.msk [vmem:[%s313 + $0x20] sm:$0xf] %vm798, %v774
        %808 = vst.msk [vmem:[%s313 + $0x24] sm:$0xf] %vm798, %v775
        %809 = vst.msk [vmem:[%s313 + $0x28] sm:$0xf] %vm798, %v776
        %810 = vst.msk [vmem:[%s313 + $0x2c] sm:$0xf] %vm798, %v777
        %811 = vst.msk [vmem:[%s313 + $0x30] sm:$0xf] %vm798, %v778
        %812 = vst.msk [vmem:[%s313 + $0x34] sm:$0xf] %vm798, %v779
        %813 = vst.msk [vmem:[%s313 + $0x38] sm:$0xf] %vm798, %v780
        %814 = vst.msk [vmem:[%s313 + $0x3c] sm:$0xf] %vm798, %v781
        %v815 = vpack.c.bf16 %v675, %v672
        %v816 = vpack.c.bf16 %v683, %v680
        %v817 = vpack.c.bf16 %v691, %v688
        %v818 = vpack.c.bf16 %v699, %v696
        %v819 = vpack.c.bf16 %v707, %v704
        %v820 = vpack.c.bf16 %v715, %v712
        %v821 = vpack.c.bf16 %v723, %v720
        %v822 = vpack.c.bf16 %v731, %v728
        %v831 = vunpack.c.l.b16 %v815
        %v832 = vunpack.c.h.b16 %v815
        %v833 = vunpack.c.l.b16 %v816
        %v834 = vunpack.c.h.b16 %v816
        %v835 = vunpack.c.l.b16 %v817
        %v836 = vunpack.c.h.b16 %v817
        %v837 = vunpack.c.l.b16 %v818
        %v838 = vunpack.c.h.b16 %v818
        %v839 = vunpack.c.l.b16 %v819
        %v840 = vunpack.c.h.b16 %v819
        %v841 = vunpack.c.l.b16 %v820
        %v842 = vunpack.c.h.b16 %v820
        %v843 = vunpack.c.l.b16 %v821
        %v844 = vunpack.c.h.b16 %v821
        %v845 = vunpack.c.l.b16 %v822
        %v846 = vunpack.c.h.b16 %v822
        %v847 = vpack.c.b16 %v831, %v831
        %v848 = vpack.c.b16 %v832, %v832
        %v849 = vpack.c.b16 %v833, %v833
        %v850 = vpack.c.b16 %v834, %v834
        %v851 = vpack.c.b16 %v835, %v835
        %v852 = vpack.c.b16 %v836, %v836
        %v853 = vpack.c.b16 %v837, %v837
        %v854 = vpack.c.b16 %v838, %v838
        %v855 = vpack.c.b16 %v839, %v839
        %v856 = vpack.c.b16 %v840, %v840
        %v857 = vpack.c.b16 %v841, %v841
        %v858 = vpack.c.b16 %v842, %v842
        %v859 = vpack.c.b16 %v843, %v843
        %v860 = vpack.c.b16 %v844, %v844
        %v861 = vpack.c.b16 %v845, %v845
        %v862 = vpack.c.b16 %v846, %v846
        %879 = vst [vmem:[%s296] sm:$0xf] %v847
        %880 = vst [vmem:[%s296 + $0x4] sm:$0xf] %v848
        %881 = vst [vmem:[%s296 + $0x8] sm:$0xf] %v849
        %882 = vst [vmem:[%s296 + $0xc] sm:$0xf] %v850
        %883 = vst [vmem:[%s296 + $0x10] sm:$0xf] %v851
        %884 = vst [vmem:[%s296 + $0x14] sm:$0xf] %v852
        %885 = vst [vmem:[%s296 + $0x18] sm:$0xf] %v853
        %886 = vst [vmem:[%s296 + $0x1c] sm:$0xf] %v854
        %887 = vst [vmem:[%s296 + $0x20] sm:$0xf] %v855
        %888 = vst [vmem:[%s296 + $0x24] sm:$0xf] %v856
        %889 = vst [vmem:[%s296 + $0x28] sm:$0xf] %v857
        %890 = vst [vmem:[%s296 + $0x2c] sm:$0xf] %v858
        %891 = vst [vmem:[%s296 + $0x30] sm:$0xf] %v859
        %892 = vst [vmem:[%s296 + $0x34] sm:$0xf] %v860
        %893 = vst [vmem:[%s296 + $0x38] sm:$0xf] %v861
        %894 = vst [vmem:[%s296 + $0x3c] sm:$0xf] %v862
        %s895 = smul.u32 16, %s22
        %p896 = scmp.lt.s32.totalorder %s895, 95
        %s897 = scalar_select %p896, %s895, 95
        %s898 = smul.addr %s897, 4
        %s899 = scalar_lea.vmem %s6, %s898
        %s900 = sand.u32 %s192, 1
        %s901 = scalar_lea.sflag [#allocation3], %s900
        %s902 = sand.u32 %s192, 1
        %s903 = smul.addr %s902, 64
        %s904 = scalar_lea.vmem [#allocation2], %s903
        // Predicated region
        $region45: #{tpu_custom_call.1} parent=43 // pred_check
          %p905 = pneg %p176
        $region46: #{tpu_custom_call.1} parent=43 // pred_check_branch
          %907 = sbr.rel (%p905) target = $region48
        $region47: #{tpu_custom_call.1} parent=43 // pred_region
          %s908 = smul.u32 16, %s22
        $region48: #{tpu_custom_call.1} parent=43 // pred_fallthru
          _
        // Predicated region
        $region49: #{tpu_custom_call.1} parent=43 // pred_check
          %p909 = pneg %p202
        $region50: #{tpu_custom_call.1} parent=43 // pred_check_branch
          %911 = sbr.rel (%p909) target = $region52
        $region51: #{tpu_custom_call.1} parent=43 // pred_region
          %s912 = smul.u32 16, %s22
          %s914 = ssub.s32 1024, 1024
          %915 = vsyncadd %s901, %s914
          %s916 = smul.addr %s912, 64
          %s917 = scalar_lea.hbm %s7, %s916
          %s918 = sshll.u32 %s904, 4
          %s919 = int_to_ptr.vmem [resolvable:$true] %s918
          %924 = dma.vmem_to_hbm [thread:$0]  %s919, 1024, %s917, %s901, 64, 64, 4
        $region52: #{tpu_custom_call.1} parent=43 // pred_fallthru
          _
      $region44: #{tpu_custom_call.1} parent=5 // pred_fallthru
        _
      %p925 = scmp.le.s32.totalorder 2, %s17
      // Predicated region
      $region53: #{tpu_custom_call.1} parent=5 // pred_check
        %p926 = pneg %p925
      $region54: #{tpu_custom_call.1} parent=5 // pred_check_branch
        %928 = sbr.rel (%p926) target = $region56
      $region55: #{tpu_custom_call.1} parent=5 // pred_region
        %s929 = ssub.s32 %s17, 2
        // Predicated region
        $region57: #{tpu_custom_call.1} parent=55 // pred_check
          %p930 = pneg %p182
        $region58: #{tpu_custom_call.1} parent=55 // pred_check_branch
          %932 = sbr.rel (%p930) target = $region60
        $region59: #{tpu_custom_call.1} parent=55 // pred_region
          %s933 = smul.u32 16, %s23
          %p934 = scmp.lt.s32.totalorder %s933, 95
          %s935 = scalar_select %p934, %s933, 95
          %s936 = smul.addr %s935, 4
          %s937 = scalar_lea.vmem %s6, %s936
        $region60: #{tpu_custom_call.1} parent=55 // pred_fallthru
          _
        // Predicated region
        $region61: #{tpu_custom_call.1} parent=55 // pred_check
          %p938 = pneg %p208
        $region62: #{tpu_custom_call.1} parent=55 // pred_check_branch
          %940 = sbr.rel (%p938) target = $region64
        $region63: #{tpu_custom_call.1} parent=55 // pred_region
          %s941 = sand.u32 %s193, 1
          %s942 = scalar_lea.sflag [#allocation3], %s941
          %s943 = sand.u32 %s193, 1
          %s944 = smul.addr %s943, 64
          %s945 = scalar_lea.vmem [#allocation2], %s944
          %946 = dma.done %s942, 1024
        $region64: #{tpu_custom_call.1} parent=55 // pred_fallthru
          _
      $region56: #{tpu_custom_call.1} parent=5 // pred_fallthru
        _
    $region6: #{tpu_custom_call.1} parent=1 // loop_footer
      %s21 = sadd.s32 1, %s17
    $region7: #{tpu_custom_call.1} parent=1 // loop_footer_branch
      %16 = sbr.rel target = $region3
    $region8: #{tpu_custom_call.1} parent=1 // loop_exit
      _
    %947 = vsyncpa [#allocation3], 1
    %s948 = scalar_lea.sflag [#allocation3], 1
    %949 = vsyncpa %s948, 1

</llo_original>
